<compile_context>
chip_gen: v6e
topology: v6e:2x2x1
jax: 0.10.0
libtpu: 0.0.40
codegen_flags: <defaults>
</compile_context>

<pallas_src>
import jax
import jax.numpy as jnp
from jax.experimental import pallas as pl
from jax.experimental.pallas import tpu as pltpu

_LANE = 128


def _hswish_kernel(x_ref, o_ref):
    # hard-swish: y = x * relu6(x + 3) / 6 == x * clip(x + 3, 0, 6) * (1/6)
    x = x_ref[...]
    o_ref[...] = (x * jnp.clip(x + 3.0, 0.0, 6.0) * (1.0 / 6.0)).astype(o_ref.dtype)


def _num_tensorcores():
    """Best-effort TC-per-chip detection (v7x has 2; v5e/v6e have 1)."""
    try:
        kind = jax.devices()[0].device_kind.lower()
    except Exception:
        return 1
    return 2 if "v7" in kind else 1


def _sublane_pack(itemsize):
    # rows per packed (sublane, lane) tile: f32 -> 8, bf16/f16 -> 16, int8/fp8 -> 32
    return max(8, 8 * (4 // max(1, itemsize)))


def hswish(x, *, target_block_bytes=4 << 20):
    """Elementwise hard-swish for any shape (e.g. NCHW conv feature maps)."""
    orig_shape = x.shape
    dtype = x.dtype
    n = x.size
    if n == 0:
        return x

    itemsize = jnp.dtype(dtype).itemsize
    sub_pack = _sublane_pack(itemsize)
    flat = x.reshape(-1)  # free view for a contiguous single-device array

    cost = pl.CostEstimate(
        flops=4 * n, transcendentals=0, bytes_accessed=2 * n * itemsize)
    cparams = pltpu.CompilerParams(
        dimension_semantics=("parallel",),
        vmem_limit_bytes=32 << 20)

    if n % _LANE == 0:
        # ---- lane-dense 2-D path (no pad, no slice) ----
        rows = n // _LANE
        block_rows = max(
            sub_pack,
            (target_block_bytes // (_LANE * itemsize)) // sub_pack * sub_pack)
        if rows <= block_rows:
            block_rows = rows  # whole array in one block
            # Optional even, packed-tile-aligned 2-way split so both v7x
            # TensorCores get work on medium arrays (skip on 1-TC chips).
            if (_num_tensorcores() > 1 and rows >= 2 * 2048
                    and rows % (2 * sub_pack) == 0):
                block_rows = rows // 2
        grid = (pl.cdiv(rows, block_rows),)
        out = pl.pallas_call(
            _hswish_kernel,
            out_shape=jax.ShapeDtypeStruct((rows, _LANE), dtype),
            grid=grid,
            in_specs=[pl.BlockSpec((block_rows, _LANE), lambda i: (i, 0))],
            out_specs=pl.BlockSpec((block_rows, _LANE), lambda i: (i, 0)),
            compiler_params=cparams,
            cost_estimate=cost,
        )(flat.reshape(rows, _LANE))
        return out.reshape(orig_shape)

    # ---- ragged path: n % 128 != 0; run on the 1-D flat array directly ----
    tile_elems = sub_pack * _LANE
    block_elems = max(
        tile_elems, (target_block_bytes // itemsize) // tile_elems * tile_elems)
    if n <= block_elems:
        block_elems = n  # single block equal to the full (ragged) array
        grid = (1,)
    else:
        grid = (pl.cdiv(n, block_elems),)  # boundary block masked by Pallas
    out = pl.pallas_call(
        _hswish_kernel,
        out_shape=jax.ShapeDtypeStruct((n,), dtype),
        grid=grid,
        in_specs=[pl.BlockSpec((block_elems,), lambda i: (i,))],
        out_specs=pl.BlockSpec((block_elems,), lambda i: (i,)),
        compiler_params=cparams,
        cost_estimate=cost,
    )(flat)
    return out.reshape(orig_shape)


def hswish_ref(x):
    xf = x.astype(jnp.float32)
    return (xf * jnp.clip(xf + 3.0, 0.0, 6.0) / 6.0).astype(x.dtype)


if __name__ == "__main__":
    key = jax.random.PRNGKey(0)

    # Main case: NCHW feature map, batch=2, channels=4, spatial=16x16 (f32).
    x = jax.random.normal(key, (2, 4, 16, 16), dtype=jnp.float32) * 4.0
    y = hswish(x)
    jax.block_until_ready(y)
    y_ref = hswish_ref(x)
    assert y.shape == x.shape and y.dtype == x.dtype
    assert jnp.allclose(y, y_ref, atol=1e-6, rtol=1e-5), "f32 mismatch vs reference"

    # bf16 path (packed-tile rows = 16), math stays in bf16 like PyTorch autocast.
    xb = x.astype(jnp.bfloat16)
    yb = hswish(xb)
    jax.block_until_ready(yb)
    yb_ref = hswish_ref(xb)
    assert yb.dtype == jnp.bfloat16
    assert jnp.allclose(yb.astype(jnp.float32), yb_ref.astype(jnp.float32),
                        atol=3e-2, rtol=3e-2), "bf16 mismatch vs reference"

    # Ragged path: element count not a multiple of 128 (no pad / no slice).
    kr = jax.random.PRNGKey(1)
    xr = jax.random.normal(kr, (2, 3, 7, 11), dtype=jnp.float32) * 4.0  # 462 elems
    yr = hswish(xr)
    jax.block_until_ready(yr)
    yr_ref = hswish_ref(xr)
    assert yr.shape == xr.shape
    assert jnp.allclose(yr, yr_ref, atol=1e-6, rtol=1e-5), "ragged mismatch vs reference"

    print("KERNEL_OK")
</pallas_src>

<mosaic_0001>
module attributes {stable_mosaic.version = 11 : i64} {
  func.func @_hswish_kernel(%arg0: i32, %arg1: memref<16x128xf32, #tpu.memory_space<vmem>>, %arg2: memref<16x128xf32, #tpu.memory_space<vmem>>) attributes {dimension_semantics = [#tpu.dimension_semantics<parallel>], iteration_bounds = array<i64: 1>, scalar_prefetch = 0 : i64, scratch_operands = 0 : i64, tpu.core_type = #tpu.core_type<tc>, window_params = [{transform_indices = @transform_0, window_bounds = array<i64: 16, 128>}, {transform_indices = @transform_1, window_bounds = array<i64: 16, 128>}]} {
    %c0 = arith.constant 0 : index
    %c0_0 = arith.constant 0 : index
    %0 = vector.load %arg1[%c0, %c0_0] : memref<16x128xf32, #tpu.memory_space<vmem>>, vector<16x128xf32>
    %cst = arith.constant 3.000000e+00 : f32
    %1 = vector.broadcast %cst : f32 to vector<16x128xf32>
    %2 = arith.addf %0, %1 : vector<16x128xf32>
    %cst_1 = arith.constant 0.000000e+00 : f32
    %cst_2 = arith.constant 6.000000e+00 : f32
    %3 = vector.broadcast %cst_1 : f32 to vector<16x128xf32>
    %4 = arith.maximumf %3, %2 : vector<16x128xf32>
    %5 = vector.broadcast %cst_2 : f32 to vector<16x128xf32>
    %6 = arith.minimumf %5, %4 : vector<16x128xf32>
    %7 = arith.mulf %0, %6 : vector<16x128xf32>
    %cst_3 = arith.constant 0.166666672 : f32
    %8 = vector.broadcast %cst_3 : f32 to vector<16x128xf32>
    %9 = arith.mulf %7, %8 : vector<16x128xf32>
    %c0_4 = arith.constant 0 : index
    %c0_5 = arith.constant 0 : index
    %10 = vector.load %arg2[%c0_4, %c0_5] : memref<16x128xf32, #tpu.memory_space<vmem>>, vector<16x128xf32>
    tpu.vector_store %arg2[%c0_4, %c0_5], %9 {strides = array<i32>} : memref<16x128xf32, #tpu.memory_space<vmem>>, vector<16x128xf32>,
    return
  }
  func.func @transform_0(%arg0: i32) -> (i32, i32) {
    %c0_i32 = arith.constant 0 : i32
    %c0_i32_0 = arith.constant 0 : i32
    return %arg0, %c0_i32 : i32, i32
  }
  func.func @transform_1(%arg0: i32) -> (i32, i32) {
    %c0_i32 = arith.constant 0 : i32
    %c0_i32_0 = arith.constant 0 : i32
    return %arg0, %c0_i32 : i32, i32
  }
}

</mosaic_0001>

<llo_original>
// kernel: tpu_custom_call.1
$region0: #{tpu_custom_call.1}
  #allocation0 [shape = 'u32[]', space=smem, size = 0x4, offset = 0x4, fixed_abs, tag = 'smem constant byte address 0x4 - core index']
  #allocation1 [shape = 'u32[144,128]{1,0:T(1,128)}', space=vmem, size = 0x12000, scoped, tag = 'internal scratch']
  %s0 = inlined_call_operand.hbm [shape: f32[16,128], index: 0, kind: input, shape index: {}]
  %s1 = inlined_call_operand.hbm [shape: f32[16,128], index: 1, kind: output, shape index: {}]
  %s2 = sld [smem:[#allocation0]]
  $region18: #{tpu_custom_call.1} parent=0
    _
  %s4 = ssub.s32 1, %s2
  %s5 = scalar_select 0, %s4, %s2
  $region1: #{tpu_custom_call.1} parent=0
    #allocation2 [shape = 'u8[8192]{0}', space=vmem, size = 0x2000, scoped, tag = 'input window, operand 0, single buffered']
    #allocation3 [shape = 's32[1]{0}', space=sflag, size = 0x4, scoped, tag = 'scoped memory for tpu_custom_call.1']
    #allocation4 [shape = 's32[1]{0}', space=sflag, size = 0x4, scoped, tag = 'scoped memory for tpu_custom_call.1']
    #allocation5 [shape = 'u8[8192]{0}', space=vmem, size = 0x2000, scoped, tag = 'output window, operand 0, single buffered']
    %6 = vsyncpa [#allocation3], 0
    %7 = vsyncpa [#allocation4], 0
    // Predicated region
    $region2: #{tpu_custom_call.1} parent=1 // pred_check
      _
    $region3: #{tpu_custom_call.1} parent=1 // pred_check_branch
      %9 = sbr.rel (0) target = $region5
    $region4: #{tpu_custom_call.1} parent=1 // pred_region
      %s11 = ssub.s32 256, 256
      %12 = vsyncadd [#allocation3], %s11
      %s13 = sshll.u32 [#allocation2], 4
      %s14 = int_to_ptr.vmem [resolvable:$true] %s13
      %19 = dma.hbm_to_vmem [thread:$0]  %s0, 256, %s14, [#allocation3], 128, 128, 8
    $region5: #{tpu_custom_call.1} parent=1 // pred_fallthru
      _
    // Predicated region
    $region6: #{tpu_custom_call.1} parent=1 // pred_check
      _
    $region7: #{tpu_custom_call.1} parent=1 // pred_check_branch
      %21 = sbr.rel (0) target = $region9
    $region8: #{tpu_custom_call.1} parent=1 // pred_region
      %22 = dma.done [#allocation3], 256
    $region9: #{tpu_custom_call.1} parent=1 // pred_fallthru
      _
    %v23 = vld [vmem:[#allocation2] sm:$0xff]
    %v24 = vld [vmem:[#allocation2 + $0x8] sm:$0xff]
    %v25 = vadd.f32 %v23, 3.0
    %v26 = vadd.f32 %v24, 3.0
    %v27 = vmax.f32 %v25, 0.0
    %v28 = vmax.f32 %v26, 0.0
    %v29 = vmin.f32 %v27, 6.0
    %v30 = vmin.f32 %v28, 6.0
    %v31 = vmul.f32 %v23, %v29
    %v32 = vmul.f32 %v24, %v30
    %v33 = vmul.f32 %v31, 0.16666667
    %v34 = vmul.f32 %v32, 0.16666667
    %35 = vst [vmem:[#allocation5] sm:$0xff] %v33
    %36 = vst [vmem:[#allocation5 + $0x8] sm:$0xff] %v34
    // Predicated region
    $region10: #{tpu_custom_call.1} parent=1 // pred_check
      _
    $region11: #{tpu_custom_call.1} parent=1 // pred_check_branch
      %38 = sbr.rel (0) target = $region13
    $region12: #{tpu_custom_call.1} parent=1 // pred_region
      %s40 = ssub.s32 256, 256
      %41 = vsyncadd [#allocation4], %s40
      %s42 = sshll.u32 [#allocation5], 4
      %s43 = int_to_ptr.vmem [resolvable:$true] %s42
      %48 = dma.vmem_to_hbm [thread:$0]  %s43, 256, %s1, [#allocation4], 128, 128, 8
    $region13: #{tpu_custom_call.1} parent=1 // pred_fallthru
      _
    // Predicated region
    $region14: #{tpu_custom_call.1} parent=1 // pred_check
      _
    $region15: #{tpu_custom_call.1} parent=1 // pred_check_branch
      %50 = sbr.rel (0) target = $region17
    $region16: #{tpu_custom_call.1} parent=1 // pred_region
      %51 = dma.done [#allocation4], 256
    $region17: #{tpu_custom_call.1} parent=1 // pred_fallthru
      _
    %52 = vsyncpa [#allocation3], 1
    %53 = vsyncpa [#allocation4], 1

</llo_original>
